<compile_context>
chip_gen: v7x
topology: tpu7x:2x2x1
jax: 0.10.0
libtpu: 0.0.40
codegen_flags: <defaults>
</compile_context>

<pallas_src>
import functools

import jax
import jax.numpy as jnp
from jax.experimental import pallas as pl
from jax.experimental.pallas import tpu as pltpu

_LANE = 128


def _round_up(x: int, m: int) -> int:
    return ((x + m - 1) // m) * m


def _sublane_multiple(dtype) -> int:
    itemsize = jnp.dtype(dtype).itemsize
    if itemsize >= 4:
        return 8
    if itemsize == 2:
        return 16
    return 32


def _vmem_budget_bytes() -> int:
    # Generation-aware budget: half of physical VMEM, capped at 96 MiB.
    # (v5e/v6e: 128 MiB physical -> 64 MiB budget; v7x: 64 MiB -> 32 MiB budget.)
    try:
        cap = int(pltpu.get_tpu_info().vmem_capacity_bytes)
    except Exception:
        cap = 64 * 1024 * 1024
    return max(16 * 1024 * 1024, min(cap // 2, 96 * 1024 * 1024))


def _pick_tile(padded_dim: int, align: int, max_tile: int) -> int:
    """Largest multiple of `align` that divides `padded_dim` and is <= max_tile."""
    q = padded_dim // align
    best = align
    for d in range(1, q + 1):
        t = d * align
        if q % d == 0 and t <= max_tile:
            best = t
    return best


# --------------------------------------------------------------------------------------
# Kernels
# --------------------------------------------------------------------------------------
def _fused_kernel(x_ref, w_ref, b_ref, o_ref):
    # Whole K per tile: single MXU matmul (f32 accumulation), bias + sin in f32 on
    # the VPU, one lane-dense store of the output tile.
    acc = jnp.dot(x_ref[...], w_ref[...], preferred_element_type=jnp.float32)
    o_ref[...] = jnp.sin(acc + b_ref[...].astype(jnp.float32)).astype(o_ref.dtype)


def _reduction_kernel(x_ref, w_ref, b_ref, o_ref, acc_ref):
    # 3-D grid path for genuinely large K: f32 accumulator resident across the K axis,
    # seeded with the broadcast bias so the epilogue is just sin + store.
    k = pl.program_id(2)

    @pl.when(k == 0)
    def _init():
        acc_ref[...] = jnp.broadcast_to(
            b_ref[...].astype(jnp.float32), acc_ref.shape
        )

    acc_ref[...] += jnp.dot(
        x_ref[...], w_ref[...], preferred_element_type=jnp.float32
    )

    @pl.when(k == pl.num_programs(2) - 1)
    def _finalize():
        o_ref[...] = jnp.sin(acc_ref[...]).astype(o_ref.dtype)


# --------------------------------------------------------------------------------------
# One-time parameter prep (hoists weight transpose / cast / padding out of forward)
# --------------------------------------------------------------------------------------
def prepare_basicblock_params(w, b, compute_dtype=jnp.bfloat16):
    """w: PyTorch-layout weight [out_planes, in_planes]; b: [out_planes].

    Returns (w_t_padded, b_padded, out_planes): weight pre-transposed to [in, out],
    cast to the MXU compute dtype and zero-padded to lane multiples; bias padded and
    kept in f32 (it is added in f32 inside the kernel epilogue).
    """
    out_planes, in_planes = w.shape
    Kp = _round_up(in_planes, _LANE)
    Np = _round_up(out_planes, _LANE)
    w_t = jnp.asarray(w).T.astype(compute_dtype)
    w_t = jnp.pad(w_t, ((0, Kp - in_planes), (0, Np - out_planes)))
    b_p = jnp.pad(jnp.asarray(b, dtype=jnp.float32), (0, Np - out_planes))
    return w_t, b_p, out_planes


# --------------------------------------------------------------------------------------
# Forward
# --------------------------------------------------------------------------------------
@functools.partial(
    jax.jit,
    static_argnames=("n_out", "compute_dtype", "tm_max", "tn_max", "tk_max",
                     "collapse_k"),
)
def basicblock_forward(x, w_t, b, *, n_out=None, compute_dtype=jnp.bfloat16,
                       tm_max=256, tn_max=256, tk_max=512, collapse_k=None):
    """Basicblock forward: sin(x @ w_t + b).

    x:    [..., in_planes]
    w_t:  [K, N]   weight stored pre-transposed ([in, out]); may be pre-padded
    b:    [N] or [1, N]  (f32); may be pre-padded
    n_out: true out_planes (defaults to w_t.shape[1]) when padded params are passed.
    """
    orig_shape = x.shape
    K = orig_shape[-1]
    x2 = x.reshape(-1, K)
    B = x2.shape[0]

    Kw, Nw = w_t.shape
    assert Kw >= K, "weight in-dim must cover x in-dim"
    N = Nw if n_out is None else n_out
    assert N <= Nw

    b2 = b.reshape(1, -1)
    assert b2.shape[1] == Nw, "bias length must match weight out-dim"

    out_dtype = x.dtype
    sub_m = _sublane_multiple(compute_dtype)

    # ---- Static tile selection -------------------------------------------------------
    budget = _vmem_budget_bytes()
    in_sz = jnp.dtype(compute_dtype).itemsize
    out_sz = jnp.dtype(out_dtype).itemsize

    tm = min(tm_max, _round_up(B, sub_m))
    Mp = _round_up(B, tm)
    Np = _round_up(Nw, _LANE)
    Kp = _round_up(Kw, _LANE)

    tn = _pick_tile(Np, _LANE, tn_max)
    # v7x megacore: with a single M tile, keep >=2 N tiles when N allows so the
    # parallel grid can be split across both TensorCores (no cost on v5e/v6e).
    if Mp == tm and Np // tn == 1 and Np >= 2 * _LANE:
        tn = _pick_tile(Np, _LANE, max(_LANE, Np // 2))

    # Collapse the K grid axis when one full-K step fits the double-buffered budget.
    collapsed_bytes = (2 * (tm * Kp + Kp * tn) * in_sz   # x & w tiles, double-buffered
                       + 2 * tm * tn * out_sz            # output tile, double-buffered
                       + 2 * tn * 4)                     # bias
    if collapse_k is None:
        collapse_k = collapsed_bytes <= int(budget * 0.75)

    # ---- Padding (weight/bias are expected pre-padded; x padded per call) -------------
    xc = x2.astype(compute_dtype)
    if Mp != B or Kp != K:
        xc = jnp.pad(xc, ((0, Mp - B), (0, Kp - K)))
    wc = w_t.astype(compute_dtype)
    if Kp != Kw or Np != Nw:
        wc = jnp.pad(wc, ((0, Kp - Kw), (0, Np - Nw)))
    bp = b2.astype(jnp.float32)
    if Np != Nw:
        bp = jnp.pad(bp, ((0, 0), (0, Np - Nw)))

    if collapse_k:
        grid = (Mp // tm, Np // tn)
        out_padded = pl.pallas_call(
            _fused_kernel,
            out_shape=jax.ShapeDtypeStruct((Mp, Np), out_dtype),
            grid_spec=pltpu.PrefetchScalarGridSpec(
                num_scalar_prefetch=0,
                grid=grid,
                in_specs=[
                    pl.BlockSpec((tm, Kp), lambda i, j: (i, 0)),   # x tile (full K)
                    pl.BlockSpec((Kp, tn), lambda i, j: (0, j)),   # w_t tile (full K)
                    pl.BlockSpec((1, tn), lambda i, j: (0, j)),    # bias tile
                ],
                out_specs=pl.BlockSpec((tm, tn), lambda i, j: (i, j)),
            ),
            compiler_params=pltpu.CompilerParams(
                dimension_semantics=("parallel", "parallel"),
                vmem_limit_bytes=int(budget),
            ),
        )(xc, wc, bp)
    else:
        tk = _pick_tile(Kp, _LANE, tk_max)
        grid = (Mp // tm, Np // tn, Kp // tk)
        out_padded = pl.pallas_call(
            _reduction_kernel,
            out_shape=jax.ShapeDtypeStruct((Mp, Np), out_dtype),
            grid_spec=pltpu.PrefetchScalarGridSpec(
                num_scalar_prefetch=0,
                grid=grid,
                in_specs=[
                    pl.BlockSpec((tm, tk), lambda i, j, k: (i, k)),
                    pl.BlockSpec((tk, tn), lambda i, j, k: (k, j)),
                    pl.BlockSpec((1, tn), lambda i, j, k: (0, j)),
                ],
                out_specs=pl.BlockSpec((tm, tn), lambda i, j, k: (i, j)),
                scratch_shapes=[pltpu.VMEM((tm, tn), jnp.float32)],
            ),
            compiler_params=pltpu.CompilerParams(
                dimension_semantics=("parallel", "parallel", "arbitrary"),
                vmem_limit_bytes=int(budget),
            ),
        )(xc, wc, bp)

    out = out_padded[:B, :N]
    return out.reshape(orig_shape[:-1] + (N,))


# --------------------------------------------------------------------------------------
# Self-test
# --------------------------------------------------------------------------------------
if __name__ == "__main__":
    key = jax.random.PRNGKey(0)

    def make_linear_params(k, in_planes, out_planes):
        kw, kb = jax.random.split(k)
        bound = 1.0 / (in_planes ** 0.5)
        w = jax.random.uniform(kw, (out_planes, in_planes), dtype=jnp.float32,
                               minval=-bound, maxval=bound)
        bias = jax.random.uniform(kb, (out_planes,), dtype=jnp.float32,
                                  minval=-bound, maxval=bound)
        return w, bias

    kx1, kp1, kx2, kp2 = jax.random.split(key, 4)

    # --- Case 1: the module's toy shape, bf16 MXU path with pre-padded params ---------
    B1, IN1, OUT1 = 8, 32, 32
    x1 = jax.random.normal(kx1, (B1, IN1), dtype=jnp.float32)
    w1, b1 = make_linear_params(kp1, IN1, OUT1)
    w_t1, b_p1, n1 = prepare_basicblock_params(w1, b1)          # one-time prep

    out1 = jax.block_until_ready(basicblock_forward(x1, w_t1, b_p1, n_out=n1))
    ref1 = jnp.sin(x1 @ w1.T + b1)
    assert out1.shape == (B1, OUT1) and out1.dtype == x1.dtype
    assert jnp.allclose(out1, ref1, atol=2.5e-2, rtol=2e-2)

    # --- Case 1b: exact f32 compute path with raw (unpadded) params --------------------
    out1_f32 = jax.block_until_ready(
        basicblock_forward(x1, jnp.asarray(w1.T), b1, compute_dtype=jnp.float32))
    assert jnp.allclose(out1_f32, ref1, atol=1e-5, rtol=1e-5)

    # --- Case 2: larger, non-tile-multiple shape; collapsed-K fused path ---------------
    B2, IN2, OUT2 = 200, 576, 384
    x2 = jax.random.normal(kx2, (B2, IN2), dtype=jnp.float32)
    w2, b2 = make_linear_params(kp2, IN2, OUT2)
    w_t2, b_p2, n2 = prepare_basicblock_params(w2, b2)

    out2 = jax.block_until_ready(basicblock_forward(x2, w_t2, b_p2, n_out=n2))
    ref2 = jnp.sin(x2 @ w2.T + b2)
    assert out2.shape == (B2, OUT2)
    assert jnp.allclose(out2, ref2, atol=2.5e-2, rtol=2e-2)

    # --- Case 3: force the 3-D-grid K-reduction path to exercise it as well ------------
    out3 = jax.block_until_ready(
        basicblock_forward(x2, w_t2, b_p2, n_out=n2, collapse_k=False, tk_max=256))
    assert jnp.allclose(out3, ref2, atol=2.5e-2, rtol=2e-2)

    print("KERNEL_OK")
</pallas_src>

<mosaic_0001>
module attributes {stable_mosaic.version = 11 : i64} {
  func.func @_fused_kernel(%arg0: i32, %arg1: i32, %arg2: memref<16x128xbf16, #tpu.memory_space<vmem>>, %arg3: memref<128x128xbf16, #tpu.memory_space<vmem>>, %arg4: memref<1x128xf32, #tpu.memory_space<vmem>>, %arg5: memref<16x128xf32, #tpu.memory_space<vmem>>) attributes {dimension_semantics = [#tpu.dimension_semantics<parallel>, #tpu.dimension_semantics<parallel>], iteration_bounds = array<i64: 1, 1>, scalar_prefetch = 0 : i64, scratch_operands = 0 : i64, tpu.core_type = #tpu.core_type<tc>, window_params = [{transform_indices = @transform_0, window_bounds = array<i64: 16, 128>}, {transform_indices = @transform_1, window_bounds = array<i64: 128, 128>}, {transform_indices = @transform_2, window_bounds = array<i64: 1, 128>}, {transform_indices = @transform_3, window_bounds = array<i64: 16, 128>}]} {
    %c0 = arith.constant 0 : index
    %c0_0 = arith.constant 0 : index
    %0 = vector.load %arg2[%c0, %c0_0] : memref<16x128xbf16, #tpu.memory_space<vmem>>, vector<16x128xbf16>
    %c0_1 = arith.constant 0 : index
    %c0_2 = arith.constant 0 : index
    %1 = vector.load %arg3[%c0_1, %c0_2] : memref<128x128xbf16, #tpu.memory_space<vmem>>, vector<128x128xbf16>
    %cst = arith.constant dense<0.000000e+00> : vector<16x128xf32>
    %2 = tpu.matmul %0, %1, %cst {dimension_numbers = #tpu.dot_dimension_numbers<[1], [0], [0], [1], [0, 0, 1, 1], [], []>} : vector<16x128xbf16>, vector<128x128xbf16>, vector<16x128xf32> -> vector<16x128xf32>
    %c0_3 = arith.constant 0 : index
    %c0_4 = arith.constant 0 : index
    %3 = vector.load %arg4[%c0_3, %c0_4] : memref<1x128xf32, #tpu.memory_space<vmem>>, vector<1x128xf32>
    %4 = vector.broadcast %3 : vector<1x128xf32> to vector<16x128xf32>
    %5 = arith.addf %2, %4 : vector<16x128xf32>
    %6 = math.sin %5 : vector<16x128xf32>
    %c0_5 = arith.constant 0 : index
    %c0_6 = arith.constant 0 : index
    %7 = vector.load %arg5[%c0_5, %c0_6] : memref<16x128xf32, #tpu.memory_space<vmem>>, vector<16x128xf32>
    tpu.vector_store %arg5[%c0_5, %c0_6], %6 {strides = array<i32>} : memref<16x128xf32, #tpu.memory_space<vmem>>, vector<16x128xf32>,
    return
  }
  func.func @transform_0(%arg0: i32, %arg1: i32) -> (i32, i32) {
    %c0_i32 = arith.constant 0 : i32
    %c0_i32_0 = arith.constant 0 : i32
    return %arg0, %c0_i32 : i32, i32
  }
  func.func @transform_1(%arg0: i32, %arg1: i32) -> (i32, i32) {
    %c0_i32 = arith.constant 0 : i32
    %c0_i32_0 = arith.constant 0 : i32
    return %c0_i32, %arg1 : i32, i32
  }
  func.func @transform_2(%arg0: i32, %arg1: i32) -> (i32, i32) {
    %c0_i32 = arith.constant 0 : i32
    %c0_i32_0 = arith.constant 0 : i32
    return %c0_i32, %arg1 : i32, i32
  }
  func.func @transform_3(%arg0: i32, %arg1: i32) -> (i32, i32) {
    %c0_i32 = arith.constant 0 : i32
    return %arg0, %arg1 : i32, i32
  }
}

</mosaic_0001>

<llo_original>
// kernel: basicblock_forward.1
$region0: #{basicblock_forward.1}
  #allocation0 [shape = 'u32[]', space=smem, size = 0x4, offset = 0x4, fixed_abs, tag = 'smem constant byte address 0x4 - core index']
  #allocation1 [shape = 'u32[144,128]{1,0:T(1,128)}', space=vmem, size = 0x12000, scoped, tag = 'internal scratch']
  %s0 = inlined_call_operand.vmem [shape: bf16[16,128], index: 0, kind: input, shape index: {}]
  %s1 = inlined_call_operand.hbm [shape: bf16[128,128], index: 1, kind: input, shape index: {}]
  %s2 = inlined_call_operand.vmem [shape: f32[1,128], index: 2, kind: input, shape index: {}]
  %s3 = inlined_call_operand.vmem [shape: f32[16,128], index: 3, kind: output, shape index: {}]
  %s4 = sld [smem:[#allocation0]]
  $region26: #{basicblock_forward.1} parent=0
    _
  %s6 = ssub.s32 1, %s4
  %s7 = scalar_select 0, %s6, %s4
  $region1: #{basicblock_forward.1} parent=0
    #allocation2 [shape = 'u8[32768]{0}', space=vmem, size = 0x8000, scoped, tag = 'input window, operand 1, single buffered']
    #allocation3 [shape = 's32[1]{0}', space=sflag, size = 0x4, scoped, tag = 'scoped memory for basicblock_forward.1']
    %8 = vsyncpa [#allocation3], 0
    // Predicated region
    $region2: #{basicblock_forward.1} parent=1 // pred_check
      _
    $region3: #{basicblock_forward.1} parent=1 // pred_check_branch
      %10 = sbr.rel (0) target = $region5
    $region4: #{basicblock_forward.1} parent=1 // pred_region
      _
    $region5: #{basicblock_forward.1} parent=1 // pred_fallthru
      _
    // Predicated region
    $region6: #{basicblock_forward.1} parent=1 // pred_check
      _
    $region7: #{basicblock_forward.1} parent=1 // pred_check_branch
      %12 = sbr.rel (0) target = $region9
    $region8: #{basicblock_forward.1} parent=1 // pred_region
      %s14 = ssub.s32 1024, 1024
      %15 = vsyncadd [#allocation3], %s14
      %s16 = sshll.u32 [#allocation2], 4
      %s17 = int_to_ptr.vmem [resolvable:$true] %s16
      %22 = dma.hbm_to_vmem [thread:$0]  %s1, 1024, %s17, [#allocation3], 64, 64, 4
    $region9: #{basicblock_forward.1} parent=1 // pred_fallthru
      _
    // Predicated region
    $region10: #{basicblock_forward.1} parent=1 // pred_check
      _
    $region11: #{basicblock_forward.1} parent=1 // pred_check_branch
      %24 = sbr.rel (0) target = $region13
    $region12: #{basicblock_forward.1} parent=1 // pred_region
      _
    $region13: #{basicblock_forward.1} parent=1 // pred_fallthru
      _
    // Predicated region
    $region14: #{basicblock_forward.1} parent=1 // pred_check
      _
    $region15: #{basicblock_forward.1} parent=1 // pred_check_branch
      %26 = sbr.rel (0) target = $region17
    $region16: #{basicblock_forward.1} parent=1 // pred_region
      %27 = dma.done [#allocation3], 1024
    $region17: #{basicblock_forward.1} parent=1 // pred_fallthru
      _
    %v29 = vld [vmem:[%s0] sm:$0xf]
    %v30 = vld [vmem:[%s0 + $0x4] sm:$0xf]
    %v31 = vld [vmem:[#allocation2] sm:$0xf]
    %v32 = vld [vmem:[#allocation2 + $0x4] sm:$0xf]
    %v33 = vld [vmem:[#allocation2 + $0x8] sm:$0xf]
    %v34 = vld [vmem:[#allocation2 + $0xc] sm:$0xf]
    %v35 = vld [vmem:[#allocation2 + $0x10] sm:$0xf]
    %v36 = vld [vmem:[#allocation2 + $0x14] sm:$0xf]
    %v37 = vld [vmem:[#allocation2 + $0x18] sm:$0xf]
    %v38 = vld [vmem:[#allocation2 + $0x1c] sm:$0xf]
    %v39 = vld [vmem:[#allocation2 + $0x20] sm:$0xf]
    %v40 = vld [vmem:[#allocation2 + $0x24] sm:$0xf]
    %v41 = vld [vmem:[#allocation2 + $0x28] sm:$0xf]
    %v42 = vld [vmem:[#allocation2 + $0x2c] sm:$0xf]
    %v43 = vld [vmem:[#allocation2 + $0x30] sm:$0xf]
    %v44 = vld [vmem:[#allocation2 + $0x34] sm:$0xf]
    %v45 = vld [vmem:[#allocation2 + $0x38] sm:$0xf]
    %v46 = vld [vmem:[#allocation2 + $0x3c] sm:$0xf]
    %v47 = vld [vmem:[%s2] sm:$0x1]
    %v49 = vlaneseq
    %v50 = vshrl.u32 %v49, 7
    %v51 = vsub.s32 0, %v50
    %v52 = vrot.slane %v47, %v51
    %v56 = vunpack.c.l.b16 %v29
    %v57 = vunpack.c.l.b16 %v30
    %v58 = vpack.c.b16 %v57, %v56
    %v76 = vunpack.c.l.b16 %v31
    %v77 = vunpack.c.l.b16 %v32
    %v78 = vunpack.c.l.b16 %v33
    %v79 = vunpack.c.l.b16 %v34
    %v80 = vunpack.c.l.b16 %v35
    %v81 = vunpack.c.l.b16 %v36
    %v82 = vunpack.c.l.b16 %v37
    %v83 = vunpack.c.l.b16 %v38
    %v84 = vunpack.c.l.b16 %v39
    %v85 = vunpack.c.l.b16 %v40
    %v86 = vunpack.c.l.b16 %v41
    %v87 = vunpack.c.l.b16 %v42
    %v88 = vunpack.c.l.b16 %v43
    %v89 = vunpack.c.l.b16 %v44
    %v90 = vunpack.c.l.b16 %v45
    %v91 = vunpack.c.l.b16 %v46
    %v92 = vpack.c.b16 %v77, %v76
    %v93 = vpack.c.b16 %v79, %v78
    %v94 = vpack.c.b16 %v81, %v80
    %v95 = vpack.c.b16 %v83, %v82
    %v96 = vpack.c.b16 %v85, %v84
    %v97 = vpack.c.b16 %v87, %v86
    %v98 = vpack.c.b16 %v89, %v88
    %v99 = vpack.c.b16 %v91, %v90
    %108 = vmatprep.subr.bf16.mxu0 0
    %109 = vmatpush1.bf16.msra.mxu0 %v92
    %110 = vmatprep.subr.bf16.mxu0 0
    %111 = vmatpush1.bf16.msra.mxu0 %v93
    %112 = vmatprep.subr.bf16.mxu0 0
    %113 = vmatpush1.bf16.msra.mxu0 %v94
    %114 = vmatprep.subr.bf16.mxu0 0
    %115 = vmatpush1.bf16.msra.mxu0 %v95
    %116 = vmatprep.subr.bf16.mxu0 0
    %117 = vmatpush1.bf16.msra.mxu0 %v96
    %118 = vmatprep.subr.bf16.mxu0 0
    %119 = vmatpush1.bf16.msra.mxu0 %v97
    %120 = vmatprep.subr.bf16.mxu0 0
    %121 = vmatpush1.bf16.msra.mxu0 %v98
    %122 = vmatprep.subr.bf16.mxu0 0
    %123 = vmatpush1.bf16.msra.mxu0 %v99
    %124 = vmatprep.subr.bf16.mxu0 0
    %125 = vmatpush1.bf16.msra.mxu0 0
    %126 = vmatprep.subr.bf16.mxu0 0
    %127 = vmatpush1.bf16.msra.mxu0 0
    %128 = vmatprep.subr.bf16.mxu0 0
    %129 = vmatpush1.bf16.msra.mxu0 0
    %130 = vmatprep.subr.bf16.mxu0 0
    %131 = vmatpush1.bf16.msra.mxu0 0
    %132 = vmatprep.subr.bf16.mxu0 0
    %133 = vmatpush1.bf16.msra.mxu0 0
    %134 = vmatprep.subr.bf16.mxu0 0
    %135 = vmatpush1.bf16.msra.mxu0 0
    %136 = vmatprep.subr.bf16.mxu0 0
    %137 = vmatpush1.bf16.msra.mxu0 0
    %138 = vmatprep.subr.bf16.mxu0 0
    %139 = vmatpush1.bf16.msra.mxu0 0
    %140 = vmatprep.mubr.bf16.mxu0 0
    %141 = vmatmul.mubr.bf16.gmra.mrb[0].mxu0 %v58
    %v142 = vpop.f32.mrb[0].mxu0
    %v143 = vadd.f32 %v52, %v142
    %v144 = vpop.f32.mrb[0].mxu0
    %v145 = vpop.f32.mrb[0].mxu0
    %v146 = vadd.f32 %v52, %v145
    %v147 = vpop.f32.mrb[0].mxu0
    %148 = vdwg.mxu0
    %v149 = vand.u32 2147483647, %v143
    %vm150 = vcmp.le.f32.partialorder %v149, 0.7853982
    %vm151 = vcmp.lt.s32.totalorder %v143, 0
    %v152 = vand.u32 %v143, 2139095040
    %v153 = vshrl.u32 %v152, 23
    %v154 = vsub.s32 %v153, 127
    %v155 = vand.u32 2147483647, %v143
    %v156 = vand.u32 %v155, 8388607
    %v157 = vor.u32 %v156, 8388608
    %v158 = vsub.s32 0, %v157
    %v159 = vadd.s32 %v154, 1
    %vm160 = vcmp.gt.s32.totalorder %v159, 0
    %v161 = vsel %vm160, %v159, 0
    %v162 = vshrl.u32 %v161, 5
    %v163 = vand.u32 %v161, 31
    %v164 = vsub.s32 32, %v163
    %v165 = vshrl.u32 683565275, %v164
    %v166 = vshll.u32 683565275, %v163
    %v167 = vshrl.u32 2475754826, %v164
    %v168 = vor.u32 %v166, %v167
    %v169 = vshll.u32 2475754826, %v163
    %v170 = vshrl.u32 2131351028, %v164
    %v171 = vor.u32 %v169, %v170
    %v172 = vshll.u32 2131351028, %v163
    %v173 = vshrl.u32 2102212464, %v164
    %v174 = vor.u32 %v172, %v173
    %v175 = vshll.u32 2102212464, %v163
    %v176 = vshrl.u32 920167782, %v164
    %v177 = vor.u32 %v175, %v176
    %v178 = vshll.u32 920167782, %v163
    %v179 = vshrl.u32 1326507024, %v164
    %v180 = vor.u32 %v178, %v179
    %vm181 = vcmp.lt.s32.totalorder %v162, 1
    %vm182 = vcmp.lt.s32.totalorder %v162, 2
    %vm183 = vcmp.lt.s32.totalorder %v162, 3
    %vm184 = vcmp.lt.s32.totalorder %v162, 4
    %v185 = vsel %vm181, %v165, %v168
    %v186 = vsel %vm184, %v174, 2102212464
    %v187 = vsel %vm183, %v171, %v186
    %v188 = vsel %vm182, %v185, %v187
    %v189 = vsel %vm181, %v168, %v171
    %v190 = vsel %vm184, %v177, 920167782
    %v191 = vsel %vm183, %v174, %v190
    %v192 = vsel %vm182, %v189, %v191
    %v193 = vsel %vm181, %v171, %v174
    %v194 = vsel %vm184, %v180, 1326507024
    %v195 = vsel %vm183, %v177, %v194
    %v196 = vsel %vm182, %v193, %v195
    %v197 = vshll.u32 %v157, 8
    %v198 = vmul.u32.u64.compose %v197, %v196
    %v199 = vextract.low.u32 %v198
    %v200 = vextract.high.u32 %v198
    %v201 = vmul.u32.u64.compose %v197, %v192
    %v202 = vextract.low.u32 %v201
    %v203 = vextract.high.u32 %v201
    %v204 = vmul.u32 %v197, %v188
    %v205 = vadd.s32 %v200, %v202
    %vm206 = vc.u32 %v200, %v202
    %v207 = vadd.s32 %v203, 1
    %v208 = vsel %vm206, %v207, %v203
    %v209 = vadd.s32 %v204, %v208
    %v210 = vadd.s32 %v209, 536870912
    %v211 = vshrl.u32 %v210, 30
    %v212 = vshll.u32 %v211, 30
    %v213 = vsub.s32 %v209, %v212
    %vm214 = vcmp.lt.s32.totalorder %v213, 0
    %v215 = vsub.s32 0, %v213
    %v216 = vsel %vm214, %v215, %v213
    %v217 = vclz %v216
    %v218 = vsub.s32 %v217, 2
    %vm219 = vcmp.gt.s32.totalorder 0, %v218
    %v220 = vsel %vm219, 0, %v218
    %v221 = vsub.s32 32, %v220
    %v222 = vshll.u32 %v213, %v220
    %v223 = vshrl.u32 %v205, %v221
    %v224 = vor.u32 %v222, %v223
    %v225 = vsub.s32 4294967266, %v220
    %v226 = vadd.s32 %v225, 127
    %v227 = vshll.u32 %v226, 23
    %v228 = vor.u32 4788187, %v227
    %v229 = vand.u32 2147483647, %v228
    %v231 = vcvt.s32.f32 %v224
    %v232 = vmul.f32 %v231, %v229
    %v233 = vxor.u32 %v232, 2147483648
    %v234 = vsel %vm151, %v233, %v232
    %v235 = vsub.s32 4, %v211
    %v236 = vsel %vm151, %v235, %v211
    %v237 = vsel %vm150, %v143, %v234
    %v238 = vsel %vm150, 0, %v236
    %v239 = vcosq.f32.pop %v237
    %v240 = vsinq.f32.pop %v237
    %vm241 = vweird.f32 %v143
    %v242 = vadd.s32 %v238, 3
    %v243 = vand.u32 %v242, 3
    %vm244 = vcmp.lt.s32.totalorder %v243, 2
    %vm245 = vcmp.eq.s32.totalorder %v243, 0
    %v246 = vxor.u32 %v240, 2147483648
    %v247 = vsel %vm245, %v239, %v246
    %vm248 = vcmp.eq.s32.totalorder %v243, 2
    %v249 = vxor.u32 %v239, 2147483648
    %v250 = vsel %vm248, %v249, %v240
    %v251 = vsel %vm244, %v247, %v250
    %v252 = vsel %vm241, nan, %v251
    %v253 = vand.u32 2147483647, %v146
    %vm254 = vcmp.le.f32.partialorder %v253, 0.7853982
    %vm255 = vcmp.lt.s32.totalorder %v146, 0
    %v256 = vand.u32 %v146, 2139095040
    %v257 = vshrl.u32 %v256, 23
    %v258 = vsub.s32 %v257, 127
    %v259 = vand.u32 2147483647, %v146
    %v260 = vand.u32 %v259, 8388607
    %v261 = vor.u32 %v260, 8388608
    %v262 = vsub.s32 0, %v261
    %v263 = vadd.s32 %v258, 1
    %vm264 = vcmp.gt.s32.totalorder %v263, 0
    %v265 = vsel %vm264, %v263, 0
    %v266 = vshrl.u32 %v265, 5
    %v267 = vand.u32 %v265, 31
    %v268 = vsub.s32 32, %v267
    %v269 = vshrl.u32 683565275, %v268
    %v270 = vshll.u32 683565275, %v267
    %v271 = vshrl.u32 2475754826, %v268
    %v272 = vor.u32 %v270, %v271
    %v273 = vshll.u32 2475754826, %v267
    %v274 = vshrl.u32 2131351028, %v268
    %v275 = vor.u32 %v273, %v274
    %v276 = vshll.u32 2131351028, %v267
    %v277 = vshrl.u32 2102212464, %v268
    %v278 = vor.u32 %v276, %v277
    %v279 = vshll.u32 2102212464, %v267
    %v280 = vshrl.u32 920167782, %v268
    %v281 = vor.u32 %v279, %v280
    %v282 = vshll.u32 920167782, %v267
    %v283 = vshrl.u32 1326507024, %v268
    %v284 = vor.u32 %v282, %v283
    %vm285 = vcmp.lt.s32.totalorder %v266, 1
    %vm286 = vcmp.lt.s32.totalorder %v266, 2
    %vm287 = vcmp.lt.s32.totalorder %v266, 3
    %vm288 = vcmp.lt.s32.totalorder %v266, 4
    %v289 = vsel %vm285, %v269, %v272
    %v290 = vsel %vm288, %v278, 2102212464
    %v291 = vsel %vm287, %v275, %v290
    %v292 = vsel %vm286, %v289, %v291
    %v293 = vsel %vm285, %v272, %v275
    %v294 = vsel %vm288, %v281, 920167782
    %v295 = vsel %vm287, %v278, %v294
    %v296 = vsel %vm286, %v293, %v295
    %v297 = vsel %vm285, %v275, %v278
    %v298 = vsel %vm288, %v284, 1326507024
    %v299 = vsel %vm287, %v281, %v298
    %v300 = vsel %vm286, %v297, %v299
    %v301 = vshll.u32 %v261, 8
    %v302 = vmul.u32.u64.compose %v301, %v300
    %v303 = vextract.low.u32 %v302
    %v304 = vextract.high.u32 %v302
    %v305 = vmul.u32.u64.compose %v301, %v296
    %v306 = vextract.low.u32 %v305
    %v307 = vextract.high.u32 %v305
    %v308 = vmul.u32 %v301, %v292
    %v309 = vadd.s32 %v304, %v306
    %vm310 = vc.u32 %v304, %v306
    %v311 = vadd.s32 %v307, 1
    %v312 = vsel %vm310, %v311, %v307
    %v313 = vadd.s32 %v308, %v312
    %v314 = vadd.s32 %v313, 536870912
    %v315 = vshrl.u32 %v314, 30
    %v316 = vshll.u32 %v315, 30
    %v317 = vsub.s32 %v313, %v316
    %vm318 = vcmp.lt.s32.totalorder %v317, 0
    %v319 = vsub.s32 0, %v317
    %v320 = vsel %vm318, %v319, %v317
    %v321 = vclz %v320
    %v322 = vsub.s32 %v321, 2
    %vm323 = vcmp.gt.s32.totalorder 0, %v322
    %v324 = vsel %vm323, 0, %v322
    %v325 = vsub.s32 32, %v324
    %v326 = vshll.u32 %v317, %v324
    %v327 = vshrl.u32 %v309, %v325
    %v328 = vor.u32 %v326, %v327
    %v329 = vsub.s32 4294967266, %v324
    %v330 = vadd.s32 %v329, 127
    %v331 = vshll.u32 %v330, 23
    %v332 = vor.u32 4788187, %v331
    %v333 = vand.u32 2147483647, %v332
    %v335 = vcvt.s32.f32 %v328
    %v336 = vmul.f32 %v335, %v333
    %v337 = vxor.u32 %v336, 2147483648
    %v338 = vsel %vm255, %v337, %v336
    %v339 = vsub.s32 4, %v315
    %v340 = vsel %vm255, %v339, %v315
    %v341 = vsel %vm254, %v146, %v338
    %v342 = vsel %vm254, 0, %v340
    %v343 = vcosq.f32.pop %v341
    %v344 = vsinq.f32.pop %v341
    %vm345 = vweird.f32 %v146
    %v346 = vadd.s32 %v342, 3
    %v347 = vand.u32 %v346, 3
    %vm348 = vcmp.lt.s32.totalorder %v347, 2
    %vm349 = vcmp.eq.s32.totalorder %v347, 0
    %v350 = vxor.u32 %v344, 2147483648
    %v351 = vsel %vm349, %v343, %v350
    %vm352 = vcmp.eq.s32.totalorder %v347, 2
    %v353 = vxor.u32 %v343, 2147483648
    %v354 = vsel %vm352, %v353, %v344
    %v355 = vsel %vm348, %v351, %v354
    %v356 = vsel %vm345, nan, %v355
    %357 = vst [vmem:[%s3] sm:$0xff] %v252
    %358 = vst [vmem:[%s3 + $0x8] sm:$0xff] %v356
    // Predicated region
    $region18: #{basicblock_forward.1} parent=1 // pred_check
      _
    $region19: #{basicblock_forward.1} parent=1 // pred_check_branch
      %360 = sbr.rel (0) target = $region21
    $region20: #{basicblock_forward.1} parent=1 // pred_region
      _
    $region21: #{basicblock_forward.1} parent=1 // pred_fallthru
      _
    // Predicated region
    $region22: #{basicblock_forward.1} parent=1 // pred_check
      _
    $region23: #{basicblock_forward.1} parent=1 // pred_check_branch
      %362 = sbr.rel (0) target = $region25
    $region24: #{basicblock_forward.1} parent=1 // pred_region
      _
    $region25: #{basicblock_forward.1} parent=1 // pred_fallthru
      _
    %363 = vsyncpa [#allocation3], 1

</llo_original>
